<compile_context>
chip_gen: v7x
topology: tpu7x:2x2x1
jax: 0.10.0
libtpu: 0.0.40
codegen_flags: <defaults>
</compile_context>

<pallas_src>
import functools

import jax
import jax.numpy as jnp
from jax.experimental import pallas as pl
from jax.experimental.pallas import tpu as pltpu


# ---------------------------------------------------------------------------
# Kernels
# ---------------------------------------------------------------------------

def _gap_small_kernel(x_ref, o_ref, *, inv_hw):
    """Fast path. x_ref: (1, C, HW); o_ref: (1, 1, C)."""
    s = jnp.sum(x_ref[...], axis=-1, dtype=jnp.float32)          # (1, C) in f32
    o_ref[...] = (s * inv_hw).reshape(o_ref.shape).astype(o_ref.dtype)


def _gap_tiled_kernel(x_ref, o_ref, acc_ref, *, hw_total, tile_hw, inv_hw, need_mask):
    """Tiled path. x_ref: (1, tile_c, tile_hw); o_ref: (1, 1, tile_c); acc: (1, tile_c) f32."""
    hw_idx = pl.program_id(2)
    last = pl.num_programs(2) - 1

    @pl.when(hw_idx == 0)
    def _init():
        acc_ref[...] = jnp.zeros_like(acc_ref)

    if need_mask:
        # Pay the mask only on the final (partial) spatial tile.
        @pl.when(hw_idx < last)
        def _full_tile():
            acc_ref[...] += jnp.sum(x_ref[...], axis=-1, dtype=jnp.float32)

        @pl.when(hw_idx == last)
        def _partial_tile():
            x = x_ref[...]
            lane = jax.lax.broadcasted_iota(jnp.int32, x.shape, dimension=2)
            valid = (hw_idx * tile_hw + lane) < hw_total
            x = jnp.where(valid, x, jnp.zeros_like(x))
            acc_ref[...] += jnp.sum(x, axis=-1, dtype=jnp.float32)
    else:
        acc_ref[...] += jnp.sum(x_ref[...], axis=-1, dtype=jnp.float32)

    @pl.when(hw_idx == last)
    def _finalize():
        mean = acc_ref[...] * inv_hw                 # fold 1/HW into the final store only
        o_ref[...] = mean.reshape(o_ref.shape).astype(o_ref.dtype)


# ---------------------------------------------------------------------------
# Tiling / sizing helpers
# ---------------------------------------------------------------------------

_TARGET_BLOCK_BYTES = 4 * 1024 * 1024     # ~4 MiB per input pipeline buffer (dtype-aware)
_FASTPATH_BLOCK_BYTES = 4 * 1024 * 1024   # whole per-batch problem fits in one block
_VMEM_LIMIT_FLOOR = 32 * 1024 * 1024
_VMEM_LIMIT_CAP = 56 * 1024 * 1024        # stay under v7x's 64 MiB physical VMEM


def _has_two_tensorcores():
    """Best-effort detection of multi-TensorCore chips (v7x). Defaults to False."""
    try:
        info = pltpu.get_tpu_info()
        for attr in ("num_tensorcores", "tensorcores_per_chip",
                     "num_cores_per_chip", "num_cores"):
            v = getattr(info, attr, None)
            if isinstance(v, int) and v > 0:
                return v >= 2
    except Exception:
        pass
    return False


def _padded_block_bytes(c, hw, dtype_bytes):
    """VMEM footprint of a (1, c, hw) block after (sublane, lane) padding."""
    sub = max(8, 32 // dtype_bytes)                 # f32 -> 8, bf16 -> 16, int8 -> 32
    pc = -(-c // sub) * sub
    phw = -(-hw // 128) * 128
    return pc * phw * dtype_bytes


def _pick_tiles(c, hw, dtype_bytes, n):
    """Choose (tile_c, tile_hw, need_mask) for the tiled path."""
    elems_budget = max(128 * 128, _TARGET_BLOCK_BYTES // dtype_bytes)

    if c % 128 != 0:
        # Keep the full channel extent so the (1, 1, C) output block stays legal
        # without channel masking; bound block bytes by shrinking the spatial tile.
        # TODO(synk): extremely large non-128-multiple C could still exceed VMEM;
        # not a realistic GAP configuration.
        tile_c = c
        hw_cap = max(128, (elems_budget // max(c, 1)) // 128 * 128)
    else:
        tile_c = None                               # decided after tile_hw
        hw_cap = max(128, (elems_budget // 128) // 128 * 128)

    # Spatial tile: prefer full extent, else an evenly dividing 128-multiple,
    # else a fixed 128-multiple with the final tile masked in-kernel.
    if hw <= hw_cap:
        tile_hw = hw
    elif hw % 128 == 0:
        tile_hw = 128
        for t in range(hw_cap, 127, -128):
            if hw % t == 0:
                tile_hw = t
                break
    else:
        tile_hw = hw_cap

    if tile_c is None:
        want = max(128, (elems_budget // tile_hw) // 128 * 128)
        # Only split channels for parallelism when the chip actually has 2 TCs
        # and the batch axis cannot feed them.
        if want >= c and c >= 256 and n == 1 and _has_two_tensorcores():
            want = max(128, (c // 2) // 128 * 128)
        want = min(want, c)
        tile_c = 128
        for t in range(want, 127, -128):            # largest 128-multiple divisor of C
            if c % t == 0:
                tile_c = t
                break

    need_mask = (hw % tile_hw) != 0
    return tile_c, tile_hw, need_mask


def _make_buffered_spec(block, index_map, depth):
    if hasattr(pl, "Buffered"):
        try:
            return pl.BlockSpec(block, index_map, pipeline_mode=pl.Buffered(depth))
        except TypeError:
            pass
    return pl.BlockSpec(block, index_map)


# ---------------------------------------------------------------------------
# Public entry point
# ---------------------------------------------------------------------------

def global_avg_pool2d(x):
    """x: (N, C, H, W) -> (N, C), mean over spatial dims (matches PyTorch)."""
    n, c, h, w = x.shape
    hw = h * w
    dtype_bytes = jnp.dtype(x.dtype).itemsize
    inv_hw = 1.0 / hw

    # Free contiguous reshape (no transpose, no extra HBM pass): NCHW -> (N, C, H*W).
    x_r = x.reshape(n, c, hw)

    # ---- Fast path: whole per-batch problem fits in a single modest block. ----
    # TODO(synk): for tiny HW (<128 lanes) a fully lane-dense (N, C*HW) layout would
    # avoid ~128/HW lane-padding inflation; footprints here are small so it is skipped.
    if _padded_block_bytes(c, hw, dtype_bytes) <= _FASTPATH_BLOCK_BYTES:
        kernel = functools.partial(_gap_small_kernel, inv_hw=inv_hw)
        out = pl.pallas_call(
            kernel,
            out_shape=jax.ShapeDtypeStruct((n, 1, c), x.dtype),
            grid_spec=pltpu.PrefetchScalarGridSpec(
                num_scalar_prefetch=0,
                grid=(n,),
                in_specs=[pl.BlockSpec((1, c, hw), lambda b: (b, 0, 0))],
                out_specs=pl.BlockSpec((1, 1, c), lambda b: (b, 0, 0)),
            ),
            compiler_params=pltpu.CompilerParams(
                dimension_semantics=("parallel",),
                vmem_limit_bytes=_VMEM_LIMIT_FLOOR,
            ),
        )(x_r)
        return out.reshape(n, c)

    # ---- Tiled path: large feature maps, f32 accumulator over spatial tiles. ----
    tile_c, tile_hw, need_mask = _pick_tiles(c, hw, dtype_bytes, n)
    grid = (n, pl.cdiv(c, tile_c), pl.cdiv(hw, tile_hw))

    # VMEM budget: 3 input buffers + double-buffered output + scratch, with headroom.
    in_block_bytes = _padded_block_bytes(tile_c, tile_hw, dtype_bytes)
    out_block_bytes = _padded_block_bytes(1, tile_c, dtype_bytes)
    scratch_bytes = _padded_block_bytes(1, tile_c, 4)
    vmem_need = 3 * in_block_bytes + 2 * out_block_bytes + scratch_bytes
    vmem_limit = min(max(_VMEM_LIMIT_FLOOR, 2 * vmem_need), _VMEM_LIMIT_CAP)

    kernel = functools.partial(
        _gap_tiled_kernel,
        hw_total=hw, tile_hw=tile_hw, inv_hw=inv_hw, need_mask=need_mask)

    # Triple-buffer the streamed input: per-step compute is a trivial reduce,
    # so the pipeline is DMA-latency bound.
    in_spec = _make_buffered_spec((1, tile_c, tile_hw), lambda b, ci, hi: (b, ci, hi), 3)

    out = pl.pallas_call(
        kernel,
        out_shape=jax.ShapeDtypeStruct((n, 1, c), x.dtype),
        grid_spec=pltpu.PrefetchScalarGridSpec(
            num_scalar_prefetch=0,
            grid=grid,
            in_specs=[in_spec],
            out_specs=pl.BlockSpec((1, 1, tile_c), lambda b, ci, hi: (b, 0, ci)),
            scratch_shapes=[pltpu.VMEM((1, tile_c), jnp.float32)],
        ),
        compiler_params=pltpu.CompilerParams(
            dimension_semantics=("parallel", "parallel", "arbitrary"),
            vmem_limit_bytes=vmem_limit,
        ),
    )(x_r)

    return out.reshape(n, c)


# ---------------------------------------------------------------------------
# Tests
# ---------------------------------------------------------------------------

if __name__ == "__main__":
    # Primary (small) test — matches the module's expected usage (fast path).
    key = jax.random.PRNGKey(0)
    n, c, h, w = 2, 4, 16, 16
    x = jax.random.normal(key, (n, c, h, w), dtype=jnp.float32)

    y = global_avg_pool2d(x)
    jax.block_until_ready(y)
    y_ref = jnp.mean(x, axis=(2, 3))
    assert y.shape == (n, c)
    assert jnp.allclose(y, y_ref, atol=1e-5, rtol=1e-5)

    # bf16 input, GAP-head-like shape (fast path, C multiple of 128).
    x2 = jax.random.normal(jax.random.PRNGKey(1), (1, 128, 80, 80), dtype=jnp.bfloat16)
    y2 = global_avg_pool2d(x2)
    jax.block_until_ready(y2)
    y2_ref = jnp.mean(x2.astype(jnp.float32), axis=(2, 3))
    assert y2.shape == (1, 128)
    assert jnp.allclose(y2.astype(jnp.float32), y2_ref, atol=2e-2, rtol=2e-2)

    # Tiled accumulator path: batch>1, multi-step spatial reduction, no masking.
    x3 = jax.random.normal(jax.random.PRNGKey(2), (2, 128, 128, 128), dtype=jnp.float32)
    y3 = global_avg_pool2d(x3)
    jax.block_until_ready(y3)
    y3_ref = jnp.mean(x3, axis=(2, 3))
    assert y3.shape == (2, 128)
    assert jnp.allclose(y3, y3_ref, atol=1e-4, rtol=1e-4)

    # Tiled path with a masked (partial) final spatial tile (HW > cap, not %128).
    x4 = jax.random.normal(jax.random.PRNGKey(3), (1, 128, 97, 97), dtype=jnp.float32)
    y4 = global_avg_pool2d(x4)
    jax.block_until_ready(y4)
    y4_ref = jnp.mean(x4, axis=(2, 3))
    assert y4.shape == (1, 128)
    assert jnp.allclose(y4, y4_ref, atol=1e-4, rtol=1e-4)

    # Non-128-multiple channel count (tiled path takes full-C blocks).
    x5 = jax.random.normal(jax.random.PRNGKey(4), (2, 8, 65, 65), dtype=jnp.float32)
    y5 = global_avg_pool2d(x5)
    jax.block_until_ready(y5)
    y5_ref = jnp.mean(x5, axis=(2, 3))
    assert y5.shape == (2, 8)
    assert jnp.allclose(y5, y5_ref, atol=1e-5, rtol=1e-5)

    print("KERNEL_OK")
</pallas_src>

<mosaic_0001>
module attributes {stable_mosaic.version = 11 : i64} {
  func.func @_gap_small_kernel(%arg0: i32, %arg1: memref<1x4x256xf32, #tpu.memory_space<vmem>>, %arg2: memref<1x1x4xf32, #tpu.memory_space<vmem>>) attributes {dimension_semantics = [#tpu.dimension_semantics<parallel>], iteration_bounds = array<i64: 2>, scalar_prefetch = 0 : i64, scratch_operands = 0 : i64, tpu.core_type = #tpu.core_type<tc>, window_params = [{transform_indices = @transform_0, window_bounds = array<i64: 1, 4, 256>}, {transform_indices = @transform_1, window_bounds = array<i64: 1, 1, 4>}]} {
    %c0 = arith.constant 0 : index
    %c0_0 = arith.constant 0 : index
    %c0_1 = arith.constant 0 : index
    %0 = vector.load %arg1[%c0, %c0_0, %c0_1] : memref<1x4x256xf32, #tpu.memory_space<vmem>>, vector<1x4x256xf32>
    %cst = arith.constant dense<0.000000e+00> : vector<1x4xf32>
    %1 = vector.multi_reduction <add>, %0, %cst [2] : vector<1x4x256xf32> to vector<1x4xf32>
    %cst_2 = arith.constant 3.906250e-03 : f32
    %2 = vector.broadcast %cst_2 : f32 to vector<1x4xf32>
    %3 = arith.mulf %1, %2 : vector<1x4xf32>
    %4 = vector.shape_cast %3 : vector<1x4xf32> to vector<1x1x4xf32>
    %c0_3 = arith.constant 0 : index
    %c0_4 = arith.constant 0 : index
    %c0_5 = arith.constant 0 : index
    %5 = vector.load %arg2[%c0_3, %c0_4, %c0_5] : memref<1x1x4xf32, #tpu.memory_space<vmem>>, vector<1x1x4xf32>
    tpu.vector_store %arg2[%c0_3, %c0_4, %c0_5], %4 {strides = array<i32>} : memref<1x1x4xf32, #tpu.memory_space<vmem>>, vector<1x1x4xf32>,
    return
  }
  func.func @transform_0(%arg0: i32) -> (i32, i32, i32) {
    %c0_i32 = arith.constant 0 : i32
    %c0_i32_0 = arith.constant 0 : i32
    %c0_i32_1 = arith.constant 0 : i32
    return %arg0, %c0_i32, %c0_i32_0 : i32, i32, i32
  }
  func.func @transform_1(%arg0: i32) -> (i32, i32, i32) {
    %c0_i32 = arith.constant 0 : i32
    %c0_i32_0 = arith.constant 0 : i32
    %c0_i32_1 = arith.constant 0 : i32
    return %arg0, %c0_i32, %c0_i32_0 : i32, i32, i32
  }
}

</mosaic_0001>

<llo_original>
// kernel: tpu_custom_call.1
$region0: #{tpu_custom_call.1}
  #allocation0 [shape = 'u32[]', space=smem, size = 0x4, offset = 0x4, fixed_abs, tag = 'smem constant byte address 0x4 - core index']
  #allocation1 [shape = 'u32[144,128]{1,0:T(1,128)}', space=vmem, size = 0x12000, scoped, tag = 'internal scratch']
  %s0 = inlined_call_operand.hbm [shape: f32[2,4,256], index: 0, kind: input, shape index: {}]
  %s1 = inlined_call_operand.hbm [shape: f32[2,1,4], index: 1, kind: output, shape index: {}]
  %s2 = sld [smem:[#allocation0]]
  $region41: #{tpu_custom_call.1} parent=0
    _
  %s4 = ssub.s32 1, %s2
  %s5 = scalar_select 0, %s4, %s2
  $region1: #{tpu_custom_call.1} parent=0
    #allocation2 [shape = 'u8[8192]{0}', space=vmem, size = 0x2000, scoped, tag = 'input window, operand 0']
    #allocation3 [shape = 's32[2]{0}', space=sflag, size = 0x8, scoped, tag = 'scoped memory for tpu_custom_call.1']
    #allocation4 [shape = 's32[2]{0}', space=sflag, size = 0x8, scoped, tag = 'scoped memory for tpu_custom_call.1']
    #allocation5 [shape = 'u8[1024]{0}', space=vmem, size = 0x400, scoped, tag = 'output window, operand 0']
    %6 = vsyncpa [#allocation3], 0
    %s7 = scalar_lea.sflag [#allocation3], 1
    %8 = vsyncpa %s7, 0
    %9 = vsyncpa [#allocation4], 0
    %s10 = scalar_lea.sflag [#allocation4], 1
    %11 = vsyncpa %s10, 0
    loop: start=0, step=1, limit=4
    $region2: #{tpu_custom_call.1} parent=1 // loop_pre_header
      _
    $region3: #{tpu_custom_call.1} parent=1 // loop_header
      %s13 = sphi 0, %s17
      %p14 = scmp.ge.s32.totalorder %s13, 4
      %s23 = sphi 0, %s25
      %s26 = sphi 0, %s23
      %s27 = sphi 0, %s26
      %s43 = sphi 0, %s27
      %s49 = sphi 0, %s51
      %s52 = sphi 0, %s49
      %s53 = sphi 0, %s52
      %s69 = sphi 0, %s53
    $region4: #{tpu_custom_call.1} parent=1 // loop_header_branch
      %16 = sbr.rel (%p14) target = $region8
    $region5: #{tpu_custom_call.1} parent=1 // loop_body
      %s18 = ssub.s32 %s13, 1
      %s19 = ssub.s32 %s13, 2
      %s20 = sadd.s32 %s13, 1
      %s21 = ssub.s32 %s13, %s20
      %p22 = scmp.eq.s32.totalorder %s21, 0
      %s24 = sadd.s32 %s23, 1
      %s25 = scalar_select %p22, %s23, %s24
      %p28 = pneg %p22
      %p29 = scmp.eq.s32.totalorder %s13, 1
      %p30 = por %p28, %p29
      %p31 = scmp.ne.s32.totalorder %s23, %s26
      %p32 = scmp.eq.s32.totalorder %s13, 0
      %p33 = por %p31, %p32
      %p34 = scmp.ne.s32.totalorder %s23, %s26
      %p35 = scmp.eq.s32.totalorder %s18, 1
      %p36 = por %p34, %p35
      %p37 = scmp.ne.s32.totalorder %s26, %s27
      %p38 = scmp.eq.s32.totalorder %s18, 0
      %p39 = por %p37, %p38
      %p40 = scmp.ne.s32.totalorder %s26, %s27
      %p41 = scmp.eq.s32.totalorder %s19, 1
      %p42 = por %p40, %p41
      %p44 = scmp.ne.s32.totalorder %s27, %s43
      %p45 = scmp.eq.s32.totalorder %s19, 0
      %p46 = por %p44, %p45
      %s47 = ssub.s32 %s13, %s20
      %p48 = scmp.eq.s32.totalorder %s47, 0
      %s50 = sadd.s32 %s49, 1
      %s51 = scalar_select %p48, %s49, %s50
      %p54 = pneg %p48
      %p55 = scmp.eq.s32.totalorder %s13, 1
      %p56 = por %p54, %p55
      %p57 = scmp.ne.s32.totalorder %s49, %s52
      %p58 = scmp.eq.s32.totalorder %s13, 0
      %p59 = por %p57, %p58
      %p60 = scmp.ne.s32.totalorder %s49, %s52
      %p61 = scmp.eq.s32.totalorder %s18, 1
      %p62 = por %p60, %p61
      %p63 = scmp.ne.s32.totalorder %s52, %s53
      %p64 = scmp.eq.s32.totalorder %s18, 0
      %p65 = por %p63, %p64
      %p66 = scmp.ne.s32.totalorder %s52, %s53
      %p67 = scmp.eq.s32.totalorder %s19, 1
      %p68 = por %p66, %p67
      %p70 = scmp.ne.s32.totalorder %s53, %s69
      %p71 = scmp.eq.s32.totalorder %s19, 0
      %p72 = por %p70, %p71
      %p73 = scmp.le.s32.totalorder 1, %s13
      %p74 = scmp.lt.s32.totalorder %s13, 3
      %p75 = pnand %p73, %p74
      %p76 = pneg %p75
      // Predicated region
      $region9: #{tpu_custom_call.1} parent=5 // pred_check
        _
      $region10: #{tpu_custom_call.1} parent=5 // pred_check_branch
        %78 = sbr.rel (%p75) target = $region12
      $region11: #{tpu_custom_call.1} parent=5 // pred_region
        %s79 = ssub.s32 %s13, 1
      $region12: #{tpu_custom_call.1} parent=5 // pred_fallthru
        _
      %p80 = scmp.lt.s32.totalorder %s13, 2
      // Predicated region
      $region13: #{tpu_custom_call.1} parent=5 // pred_check
        %p81 = pneg %p80
      $region14: #{tpu_custom_call.1} parent=5 // pred_check_branch
        %83 = sbr.rel (%p81) target = $region16
      $region15: #{tpu_custom_call.1} parent=5 // pred_region
        // Predicated region
        $region17: #{tpu_custom_call.1} parent=15 // pred_check
          %p84 = pneg %p33
        $region18: #{tpu_custom_call.1} parent=15 // pred_check_branch
          %86 = sbr.rel (%p84) target = $region20
        $region19: #{tpu_custom_call.1} parent=15 // pred_region
          %s87 = sand.u32 %s23, 1
          %s88 = scalar_lea.sflag [#allocation3], %s87
          %s89 = sand.u32 %s23, 1
          %s90 = smul.addr %s89, 8
          %s91 = scalar_lea.vmem [#allocation2], %s90
          %s93 = ssub.s32 128, 128
          %94 = vsyncadd %s88, %s93
          %s95 = smul.addr %s13, 2
          %s96 = smul.addr %s95, 64
          %s97 = scalar_lea.hbm %s0, %s96
          %s99 = sshll.u32 %s91, 4
          %s100 = int_to_ptr.vmem [resolvable:$true] %s99
          %102 = dma.hbm_to_vmem [thread:$0]  %s97, 128, %s100, %s88
        $region20: #{tpu_custom_call.1} parent=15 // pred_fallthru
          _
      $region16: #{tpu_custom_call.1} parent=5 // pred_fallthru
        _
      %p103 = scmp.le.s32.totalorder 1, %s13
      %p104 = scmp.lt.s32.totalorder %s13, 3
      %p105 = pnand %p103, %p104
      %p106 = pneg %p105
      // Predicated region
      $region21: #{tpu_custom_call.1} parent=5 // pred_check
        _
      $region22: #{tpu_custom_call.1} parent=5 // pred_check_branch
        %108 = sbr.rel (%p105) target = $region24
      $region23: #{tpu_custom_call.1} parent=5 // pred_region
        %s109 = ssub.s32 %s13, 1
        %s110 = sand.u32 %s26, 1
        %s111 = scalar_lea.sflag [#allocation3], %s110
        %s112 = sand.u32 %s26, 1
        %s113 = smul.addr %s112, 8
        %s114 = scalar_lea.vmem [#allocation2], %s113
        // Predicated region
        $region25: #{tpu_custom_call.1} parent=23 // pred_check
          %p115 = pneg %p39
        $region26: #{tpu_custom_call.1} parent=23 // pred_check_branch
          %117 = sbr.rel (%p115) target = $region28
        $region27: #{tpu_custom_call.1} parent=23 // pred_region
          %118 = dma.done %s111, 128
        $region28: #{tpu_custom_call.1} parent=23 // pred_fallthru
          _
        %s119 = sand.u32 %s26, 1
        %s120 = scalar_lea.sflag [#allocation3], %s119
        %s121 = sand.u32 %s26, 1
        %s122 = smul.addr %s121, 8
        %s123 = scalar_lea.vmem [#allocation2], %s122
        %p124 = pneg %p39
        %p125 = pneg %p36
        %p126 = pneg %p65
        %p127 = pneg %p62
        %s128 = sand.u32 %s52, 1
        %s129 = scalar_lea.sflag [#allocation4], %s128
        %s130 = sand.u32 %s52, 1
        %s131 = scalar_lea.vmem [#allocation5], %s130
        %v132 = vld [vmem:[%s114] sm:$0xff]
        %v134 = vcombine.high %v132, %v132
        %vm136 = vcmask 1043456
        %v137 = vsel %vm136, %v132, 0.0
        %v138 = vsel %vm136, %v134, 0.0
        %v139 = vadd.f32 %v137, %v138
        %140 = vadd.xlane.f32.xlu0 %v139
        %v141 = vpop.xlane.xlu0 %140
        %v142 = vmul.f32 %v141, 0.00390625
        %v144 = vlaneseq
        %v145 = vand.u32 %v144, 127
        %v146 = vlaneseq
        %v147 = vshrl.u32 %v146, 7
        %v148 = vsub.s32 %v145, %v147
        %v149 = vrot.slane %v142, %v148
        %vm151 = vcmask 24576
        %152 = vst.msk [vmem:[%s131] sm:$0x1] %vm151, %v149
        %s153 = sand.u32 %s52, 1
        %s154 = scalar_lea.sflag [#allocation4], %s153
        %s155 = sand.u32 %s52, 1
        %s156 = scalar_lea.vmem [#allocation5], %s155
        // Predicated region
        $region29: #{tpu_custom_call.1} parent=23 // pred_check
          %p157 = pneg %p62
        $region30: #{tpu_custom_call.1} parent=23 // pred_check_branch
          %159 = sbr.rel (%p157) target = $region32
        $region31: #{tpu_custom_call.1} parent=23 // pred_region
          %s161 = ssub.s32 16, 16
          %162 = vsyncadd %s154, %s161
          %s163 = smul.addr %s18, 16
          %s164 = scalar_lea.hbm %s1, %s163
          %s166 = sshll.u32 %s156, 4
          %s167 = int_to_ptr.vmem [resolvable:$true] %s166
          %169 = dma.vmem_to_hbm [thread:$0]  %s167, 16, %s164, %s154
        $region32: #{tpu_custom_call.1} parent=23 // pred_fallthru
          _
      $region24: #{tpu_custom_call.1} parent=5 // pred_fallthru
        _
      %p170 = scmp.le.s32.totalorder 2, %s13
      // Predicated region
      $region33: #{tpu_custom_call.1} parent=5 // pred_check
        %p171 = pneg %p170
      $region34: #{tpu_custom_call.1} parent=5 // pred_check_branch
        %173 = sbr.rel (%p171) target = $region36
      $region35: #{tpu_custom_call.1} parent=5 // pred_region
        %s174 = ssub.s32 %s13, 2
        // Predicated region
        $region37: #{tpu_custom_call.1} parent=35 // pred_check
          %p175 = pneg %p68
        $region38: #{tpu_custom_call.1} parent=35 // pred_check_branch
          %177 = sbr.rel (%p175) target = $region40
        $region39: #{tpu_custom_call.1} parent=35 // pred_region
          %s178 = sand.u32 %s53, 1
          %s179 = scalar_lea.sflag [#allocation4], %s178
          %s180 = sand.u32 %s53, 1
          %s181 = scalar_lea.vmem [#allocation5], %s180
          %182 = dma.done %s179, 16
        $region40: #{tpu_custom_call.1} parent=35 // pred_fallthru
          _
      $region36: #{tpu_custom_call.1} parent=5 // pred_fallthru
        _
    $region6: #{tpu_custom_call.1} parent=1 // loop_footer
      %s17 = sadd.s32 1, %s13
    $region7: #{tpu_custom_call.1} parent=1 // loop_footer_branch
      %12 = sbr.rel target = $region3
    $region8: #{tpu_custom_call.1} parent=1 // loop_exit
      _
    %183 = vsyncpa [#allocation3], 1
    %s184 = scalar_lea.sflag [#allocation3], 1
    %185 = vsyncpa %s184, 1
    %186 = vsyncpa [#allocation4], 1
    %s187 = scalar_lea.sflag [#allocation4], 1
    %188 = vsyncpa %s187, 1

</llo_original>
